<compile_context>
chip_gen: v7x
topology: tpu7x:2x2x1
jax: 0.10.0
libtpu: 0.0.40
codegen_flags: <defaults>
</compile_context>

<pallas_src>
import math

import jax
import jax.numpy as jnp
from jax import lax
from jax.experimental import pallas as pl
from jax.experimental.pallas import tpu as pltpu

# ---------------- problem sizes (small, consistent with the module) ----------------
BATCH = 8
D_NUMERICAL = 6
CATEGORIES = [3, 5, 7]          # three categorical columns
N_CAT = len(CATEGORIES)
N_TOTAL_CAT = sum(CATEGORIES)
D_TOKEN = 32
N_LATENT_TOKENS = 0             # asserted == 0 in the PyTorch module
N_TOKENS = D_NUMERICAL + N_CAT


# ---------------- kernel ----------------
def tokenizer_kernel(x_num_ref, x_cat_ref, off_ref, w_ref, emb_ref, out_ref):
    """Whole batch in one invocation.

    x_num_ref : VMEM f32 (B*D_NUM, 1)   numeric features (batch-major, feature-minor)
    x_cat_ref : VMEM i32 (B*N_CAT, 1)   categorical codes (batch-major, column-minor)
    off_ref   : VMEM i32 (B*N_CAT, 1)   category offsets replicated to the same rows
    w_ref     : VMEM f32 (D_NUM, D_TOKEN)        numeric-token weights
    emb_ref   : VMEM f32 (N_TOTAL_CAT, D_TOKEN)  embedding table
    out_ref   : VMEM f32 (B*N_TOKENS, D_TOKEN)   [numeric rows ; categorical rows]
    """
    d_num, d_token = w_ref.shape
    rows_num = x_num_ref.shape[0]
    rows_cat = x_cat_ref.shape[0]
    n_emb = emb_ref.shape[0]
    batch = rows_num // d_num

    # ---- numeric tokens: out[b*d_num + t, :] = x_num[b, t] * weight[t, :]  (VPU, exact) ----
    w_rep = jnp.concatenate([w_ref[...]] * batch, axis=0)        # (rows_num, d_token)
    out_ref[:rows_num, :] = x_num_ref[...] * w_rep               # lane-broadcast multiply

    # ---- categorical tokens: embedding gather as a one-hot MXU matmul ----
    sel = x_cat_ref[...] + off_ref[...]                          # (rows_cat, 1) table-row id
    col = lax.broadcasted_iota(jnp.int32, (rows_cat, n_emb), 1)  # (rows_cat, n_emb)
    onehot = (col == sel).astype(jnp.float32)
    out_ref[rows_num:, :] = jnp.dot(onehot, emb_ref[...],
                                    preferred_element_type=jnp.float32)


# ---------------- wrapper ----------------
@jax.jit
def tokenizer_forward(x_num, x_cat, weight, emb_table, cat_offsets):
    b, d_num = x_num.shape
    n_cat = x_cat.shape[1]
    d_token = weight.shape[1]
    rows_num, rows_cat = b * d_num, b * n_cat

    # pure layout plumbing: one value / one code per output-token row
    x_num_col = x_num.astype(jnp.float32).reshape(rows_num, 1)
    x_cat_col = x_cat.astype(jnp.int32).reshape(rows_cat, 1)
    off_col = jnp.tile(cat_offsets.astype(jnp.int32), (b,)).reshape(rows_cat, 1)

    out = pl.pallas_call(
        tokenizer_kernel,
        out_shape=jax.ShapeDtypeStruct((rows_num + rows_cat, d_token), jnp.float32),
        in_specs=[pl.BlockSpec(memory_space=pltpu.MemorySpace.VMEM)] * 5,
        out_specs=pl.BlockSpec(memory_space=pltpu.MemorySpace.VMEM),
    )(x_num_col, x_cat_col, off_col, weight, emb_table)

    # back to the module's (B, n_tokens, d_token): numeric tokens first, then categorical
    out_num = out[:rows_num].reshape(b, d_num, d_token)
    out_cat = out[rows_num:].reshape(b, n_cat, d_token)
    return jnp.concatenate([out_num, out_cat], axis=1)


# ---------------- deterministic parameter init (mirrors kaiming_uniform_(a=sqrt(5))) ----------------
def kaiming_uniform(key, shape, a=math.sqrt(5)):
    fan_in = shape[1]
    gain = math.sqrt(2.0 / (1.0 + a * a))
    bound = gain * math.sqrt(3.0 / fan_in)
    return jax.random.uniform(key, shape, jnp.float32, minval=-bound, maxval=bound)


if __name__ == "__main__":
    root = jax.random.PRNGKey(0)
    k_w, k_emb, k_xn, k_xc = jax.random.split(root, 4)

    # parameters (synthetic, deterministic)
    weight = kaiming_uniform(k_w, (D_NUMERICAL + N_LATENT_TOKENS, D_TOKEN))
    emb_table = kaiming_uniform(k_emb, (N_TOTAL_CAT, D_TOKEN))
    cat_offsets = jnp.cumsum(jnp.asarray([0] + CATEGORIES[:-1], dtype=jnp.int32))

    # inputs
    x_num = jax.random.normal(k_xn, (BATCH, D_NUMERICAL), jnp.float32)
    x_cat = jnp.stack(
        [jax.random.randint(jax.random.fold_in(k_xc, j), (BATCH,), 0, CATEGORIES[j])
         for j in range(N_CAT)],
        axis=1,
    ).astype(jnp.int32)

    # run kernel
    out = tokenizer_forward(x_num, x_cat, weight, emb_table, cat_offsets)
    out = jax.block_until_ready(out)

    # pure-JAX reference (same semantics as the PyTorch forward)
    ref_num = weight[None, :, :] * x_num[:, :, None]
    ref_cat = emb_table[x_cat + cat_offsets[None, :]]
    ref = jnp.concatenate([ref_num, ref_cat], axis=1)

    assert out.shape == (BATCH, N_TOKENS, D_TOKEN)
    # numeric tokens are exact f32 (VPU); categorical tokens go through the MXU, which
    # may round the embedding operand toward bf16 (|err| <= ~2^-9 * |emb| ~ 4e-4).
    assert jnp.allclose(out, ref, atol=2e-3, rtol=2e-3), "mismatch vs reference"

    print("KERNEL_OK")
</pallas_src>

<mosaic_0001>
module attributes {stable_mosaic.version = 11 : i64} {
  func.func @tokenizer_kernel(%arg0: memref<48x1xf32, #tpu.memory_space<vmem>>, %arg1: memref<24x1xi32, #tpu.memory_space<vmem>>, %arg2: memref<24x1xi32, #tpu.memory_space<vmem>>, %arg3: memref<6x32xf32, #tpu.memory_space<vmem>>, %arg4: memref<15x32xf32, #tpu.memory_space<vmem>>, %arg5: memref<72x32xf32, #tpu.memory_space<vmem>>) attributes {dimension_semantics = [], scalar_prefetch = 0 : i64, scratch_operands = 0 : i64, tpu.core_type = #tpu.core_type<tc>} {
    %c0 = arith.constant 0 : index
    %c0_0 = arith.constant 0 : index
    %0 = vector.load %arg3[%c0, %c0_0] : memref<6x32xf32, #tpu.memory_space<vmem>>, vector<6x32xf32>
    %1 = tpu.concatenate %0, %0, %0, %0, %0, %0, %0, %0 in 0 : vector<6x32xf32>, vector<6x32xf32>, vector<6x32xf32>, vector<6x32xf32>, vector<6x32xf32>, vector<6x32xf32>, vector<6x32xf32>, vector<6x32xf32> -> vector<48x32xf32>
    %c0_1 = arith.constant 0 : index
    %c0_2 = arith.constant 0 : index
    %2 = vector.load %arg0[%c0_1, %c0_2] : memref<48x1xf32, #tpu.memory_space<vmem>>, vector<48x1xf32>
    %3 = vector.broadcast %2 : vector<48x1xf32> to vector<48x32xf32>
    %4 = arith.mulf %3, %1 : vector<48x32xf32>
    %c0_3 = arith.constant 0 : index
    %c0_4 = arith.constant 0 : index
    %5 = vector.load %arg5[%c0_3, %c0_4] : memref<72x32xf32, #tpu.memory_space<vmem>>, vector<48x32xf32>
    tpu.vector_store %arg5[%c0_3, %c0_4], %4 {strides = array<i32>} : memref<72x32xf32, #tpu.memory_space<vmem>>, vector<48x32xf32>,
    %c0_5 = arith.constant 0 : index
    %c0_6 = arith.constant 0 : index
    %6 = vector.load %arg1[%c0_5, %c0_6] : memref<24x1xi32, #tpu.memory_space<vmem>>, vector<24x1xi32>
    %c0_7 = arith.constant 0 : index
    %c0_8 = arith.constant 0 : index
    %7 = vector.load %arg2[%c0_7, %c0_8] : memref<24x1xi32, #tpu.memory_space<vmem>>, vector<24x1xi32>
    %8 = arith.addi %6, %7 : vector<24x1xi32>
    %9 = tpu.iota {dimensions = array<i32: 1>} : vector<24x15xi32>
    %10 = vector.broadcast %8 : vector<24x1xi32> to vector<24x15xi32>
    %11 = arith.cmpi eq, %9, %10 : vector<24x15xi32>
    %12 = arith.extui %11 : vector<24x15xi1> to vector<24x15xi32>
    %13 = arith.sitofp %12 : vector<24x15xi32> to vector<24x15xf32>
    %c0_9 = arith.constant 0 : index
    %c0_10 = arith.constant 0 : index
    %14 = vector.load %arg4[%c0_9, %c0_10] : memref<15x32xf32, #tpu.memory_space<vmem>>, vector<15x32xf32>
    %cst = arith.constant dense<0.000000e+00> : vector<24x32xf32>
    %15 = tpu.matmul %13, %14, %cst {dimension_numbers = #tpu.dot_dimension_numbers<[1], [0], [0], [1], [0, 0, 1, 1], [], []>} : vector<24x15xf32>, vector<15x32xf32>, vector<24x32xf32> -> vector<24x32xf32>
    %c48 = arith.constant 48 : index
    %c0_11 = arith.constant 0 : index
    %16 = vector.load %arg5[%c48, %c0_11] : memref<72x32xf32, #tpu.memory_space<vmem>>, vector<24x32xf32>
    tpu.vector_store %arg5[%c48, %c0_11], %15 {strides = array<i32>} : memref<72x32xf32, #tpu.memory_space<vmem>>, vector<24x32xf32>,
    return
  }
}

</mosaic_0001>

<llo_original>
// kernel: tile.8
$region0: #{tile.8}
  #allocation0 [shape = 's32[1]{0}', space=sflag, size = 0x4, scoped, tag = 'scoped memory for tile.8']
  %s0 = inlined_call_operand.vmem [shape: s32[3], index: 0, kind: input, shape index: {}]
  %s1 = inlined_call_operand.vmem [shape: s32[8,3], index: 1, kind: output, shape index: {}]
  // Predicated region
  $region2: #{tile.8} parent=0 // pred_check
    _
  $region3: #{tile.8} parent=0 // pred_check_branch
    %3 = sbr.rel (0) target = $region5
  $region4: #{tile.8} parent=0 // pred_region
    _
  $region5: #{tile.8} parent=0 // pred_fallthru
    _
  %v4 = vld [vmem:[%s0] ss:$0 sm:$0xff]
  %5 = vst [vmem:[%s1] sm:$0xff] %v4

// kernel: tile.0
$region0: #{tile.0}
  %s0 = inlined_call_operand.vmem [shape: s32[8,3], index: 0, kind: input, shape index: {}]
  %s1 = inlined_call_operand.vmem [shape: s32[24,1], index: 1, kind: output, shape index: {}]
  %v2 = vld [vmem:[%s0] sm:$0xff]
  %vm3 = vcmask 7168
  %4 = vst.msk [vmem:[%s1] ss:$3 sm:$0xff] %vm3, %v2
  %v5 = vld [vmem:[%s0] sm:$0xff]
  %6 = vrot.lane.b32.xlu0 %v5, 127
  %v7 = vpop.permute.xlu0 %6
  %vm8 = vcmask 7168
  %s9 = scalar_lea.vmem %s1, 1
  %10 = vst.msk [vmem:[%s9] ss:$3 sm:$0xff] %vm8, %v7
  %v11 = vld [vmem:[%s0] sm:$0xff]
  %12 = vrot.lane.b32.xlu0 %v11, 126
  %v13 = vpop.permute.xlu0 %12
  %vm14 = vcmask 7168
  %s15 = scalar_lea.vmem %s1, 2
  %16 = vst.msk [vmem:[%s15] ss:$3 sm:$0xff] %vm14, %v13

// kernel: tokenizer_forward.1
$region0: #{tokenizer_forward.1}
  #allocation0 [shape = 'u32[]', space=smem, size = 0x4, offset = 0x4, fixed_abs, tag = 'smem constant byte address 0x4 - core index']
  #allocation1 [shape = 'u32[144,128]{1,0:T(1,128)}', space=vmem, size = 0x12000, scoped, tag = 'internal scratch']
  %s0 = inlined_call_operand.vmem [shape: f32[48,1], index: 0, kind: input, shape index: {}]
  %s1 = inlined_call_operand.vmem [shape: s32[24,1], index: 1, kind: input, shape index: {}]
  %s2 = inlined_call_operand.vmem [shape: s32[24,1], index: 2, kind: input, shape index: {}]
  %s3 = inlined_call_operand.vmem [shape: f32[6,32], index: 3, kind: input, shape index: {}]
  %s4 = inlined_call_operand.vmem [shape: f32[15,32], index: 4, kind: input, shape index: {}]
  %s5 = inlined_call_operand.vmem [shape: f32[72,32], index: 5, kind: output, shape index: {}]
  %s6 = sld [smem:[#allocation0]]
  $region30: #{tokenizer_forward.1} parent=0
    _
  %s8 = ssub.s32 1, %s6
  %s9 = scalar_select 0, %s8, %s6
  // Predicated region
  $region2: #{tokenizer_forward.1} parent=0 // pred_check
    _
  $region3: #{tokenizer_forward.1} parent=0 // pred_check_branch
    %11 = sbr.rel (0) target = $region5
  $region4: #{tokenizer_forward.1} parent=0 // pred_region
    _
  $region5: #{tokenizer_forward.1} parent=0 // pred_fallthru
    _
  // Predicated region
  $region6: #{tokenizer_forward.1} parent=0 // pred_check
    _
  $region7: #{tokenizer_forward.1} parent=0 // pred_check_branch
    %13 = sbr.rel (0) target = $region9
  $region8: #{tokenizer_forward.1} parent=0 // pred_region
    _
  $region9: #{tokenizer_forward.1} parent=0 // pred_fallthru
    _
  // Predicated region
  $region10: #{tokenizer_forward.1} parent=0 // pred_check
    _
  $region11: #{tokenizer_forward.1} parent=0 // pred_check_branch
    %15 = sbr.rel (0) target = $region13
  $region12: #{tokenizer_forward.1} parent=0 // pred_region
    _
  $region13: #{tokenizer_forward.1} parent=0 // pred_fallthru
    _
  // Predicated region
  $region14: #{tokenizer_forward.1} parent=0 // pred_check
    _
  $region15: #{tokenizer_forward.1} parent=0 // pred_check_branch
    %17 = sbr.rel (0) target = $region17
  $region16: #{tokenizer_forward.1} parent=0 // pred_region
    _
  $region17: #{tokenizer_forward.1} parent=0 // pred_fallthru
    _
  // Predicated region
  $region18: #{tokenizer_forward.1} parent=0 // pred_check
    _
  $region19: #{tokenizer_forward.1} parent=0 // pred_check_branch
    %19 = sbr.rel (0) target = $region21
  $region20: #{tokenizer_forward.1} parent=0 // pred_region
    _
  $region21: #{tokenizer_forward.1} parent=0 // pred_fallthru
    _
  %v20 = vld [vmem:[%s3] sm:$0x3f]
  %v22 = vrot.slane %v20, 2
  %v24 = vrot.slane %v20, 4
  %v26 = vrot.slane %v20, 6
  %vm28 = vcmask 1045504
  %v29 = vsel %vm28, %v20, %v22
  %vm30 = vcmask 1043456
  %v31 = vsel %vm30, %v22, %v24
  %vm32 = vcmask 1041408
  %v33 = vsel %vm32, %v24, %v26
  %v34 = vld [vmem:[%s0] sm:$0xff]
  %v35 = vld [vmem:[%s0 + $0x8] sm:$0xff]
  %v36 = vld [vmem:[%s0 + $0x10] sm:$0xff]
  %v37 = vld [vmem:[%s0 + $0x18] sm:$0xff]
  %v38 = vld [vmem:[%s0 + $0x20] sm:$0xff]
  %v39 = vld [vmem:[%s0 + $0x28] sm:$0xff]
  %41 = vset.pattern.permute.xlu0 0
  %42 = vperm.xlu0 %41, %v34
  %v43 = vpop.permute.xlu0 %42
  %46 = vset.pattern.permute.xlu0 0
  %47 = vperm.xlu0 %46, %v35
  %v48 = vpop.permute.xlu0 %47
  %51 = vset.pattern.permute.xlu0 0
  %52 = vperm.xlu0 %51, %v36
  %v53 = vpop.permute.xlu0 %52
  %56 = vset.pattern.permute.xlu0 0
  %57 = vperm.xlu0 %56, %v37
  %v58 = vpop.permute.xlu0 %57
  %61 = vset.pattern.permute.xlu0 0
  %62 = vperm.xlu0 %61, %v38
  %v63 = vpop.permute.xlu0 %62
  %66 = vset.pattern.permute.xlu0 0
  %67 = vperm.xlu0 %66, %v39
  %v68 = vpop.permute.xlu0 %67
  %v70 = vmul.f32 %v43, %v29
  %v71 = vmul.f32 %v48, %v31
  %v72 = vmul.f32 %v53, %v33
  %v73 = vmul.f32 %v58, %v29
  %v74 = vmul.f32 %v63, %v31
  %v75 = vmul.f32 %v68, %v33
  %vm76 = vcmask 261120
  %77 = vst.msk [vmem:[%s5] sm:$0xff] %vm76, %v70
  %78 = vst.msk [vmem:[%s5 + $0x8] sm:$0xff] %vm76, %v71
  %79 = vst.msk [vmem:[%s5 + $0x10] sm:$0xff] %vm76, %v72
  %80 = vst.msk [vmem:[%s5 + $0x18] sm:$0xff] %vm76, %v73
  %81 = vst.msk [vmem:[%s5 + $0x20] sm:$0xff] %vm76, %v74
  %82 = vst.msk [vmem:[%s5 + $0x28] sm:$0xff] %vm76, %v75
  %v83 = vld [vmem:[%s1] sm:$0xff]
  %v84 = vld [vmem:[%s1 + $0x8] sm:$0xff]
  %v85 = vld [vmem:[%s1 + $0x10] sm:$0xff]
  %v86 = vld [vmem:[%s2] sm:$0xff]
  %v87 = vld [vmem:[%s2 + $0x8] sm:$0xff]
  %v88 = vld [vmem:[%s2 + $0x10] sm:$0xff]
  %v89 = vadd.s32 %v83, %v86
  %v90 = vadd.s32 %v84, %v87
  %v91 = vadd.s32 %v85, %v88
  %v92 = vlaneseq
  %v93 = vand.u32 %v92, 127
  %94 = vset.pattern.permute.xlu0 0
  %95 = vperm.xlu0 %94, %v89
  %v96 = vpop.permute.xlu0 %95
  %97 = vset.pattern.permute.xlu0 0
  %98 = vperm.xlu0 %97, %v90
  %v99 = vpop.permute.xlu0 %98
  %100 = vset.pattern.permute.xlu0 0
  %101 = vperm.xlu0 %100, %v91
  %v102 = vpop.permute.xlu0 %101
  %vm103 = vcmp.eq.s32.totalorder %v93, %v96
  %vm104 = vcmp.eq.s32.totalorder %v93, %v99
  %vm105 = vcmp.eq.s32.totalorder %v93, %v102
  %v106 = vsel %vm103, 1, 0
  %v107 = vsel %vm104, 1, 0
  %v108 = vsel %vm105, 1, 0
  %v109 = vcvt.s32.f32 %v106
  %v110 = vcvt.s32.f32 %v107
  %v111 = vcvt.s32.f32 %v108
  %v112 = vld [vmem:[%s4] sm:$0xff]
  %v113 = vld [vmem:[%s4 + $0x8] sm:$0x7f]
  %vm114 = vcmask 121856
  %v116 = vsel %vm114, %v109, 0
  %v119 = vsel %vm114, %v110, 0
  %v122 = vsel %vm114, %v111, 0
  %vm124 = vcmask 1046528
  %v126 = vsel %vm124, %v113, 0
  %128 = vmatprep.subr.mxu0 0.0
  %129 = vmatpush1.msra.mxu0 %v112
  %130 = vmatprep.subr.mxu0 0.0
  %131 = vmatpush1.msra.mxu0 %v126
  %132 = vmatprep.subr.mxu0 0.0
  %133 = vmatpush1.msra.mxu0 0.0
  %134 = vmatprep.subr.mxu0 0.0
  %135 = vmatpush1.msra.mxu0 0.0
  %136 = vmatprep.subr.mxu0 0.0
  %137 = vmatpush1.msra.mxu0 0.0
  %138 = vmatprep.subr.mxu0 0.0
  %139 = vmatpush1.msra.mxu0 0.0
  %140 = vmatprep.subr.mxu0 0.0
  %141 = vmatpush1.msra.mxu0 0.0
  %142 = vmatprep.subr.mxu0 0.0
  %143 = vmatpush1.msra.mxu0 0.0
  %144 = vmatprep.subr.mxu0 0.0
  %145 = vmatpush1.msra.mxu0 0.0
  %146 = vmatprep.subr.mxu0 0.0
  %147 = vmatpush1.msra.mxu0 0.0
  %148 = vmatprep.subr.mxu0 0.0
  %149 = vmatpush1.msra.mxu0 0.0
  %150 = vmatprep.subr.mxu0 0.0
  %151 = vmatpush1.msra.mxu0 0.0
  %152 = vmatprep.subr.mxu0 0.0
  %153 = vmatpush1.msra.mxu0 0.0
  %154 = vmatprep.subr.mxu0 0.0
  %155 = vmatpush1.msra.mxu0 0.0
  %156 = vmatprep.subr.mxu0 0.0
  %157 = vmatpush1.msra.mxu0 0.0
  %158 = vmatprep.subr.mxu0 0.0
  %159 = vmatpush1.msra.mxu0 0.0
  %160 = vmatprep.subr.mxu0 0.0
  %161 = vmatpush1.msra.mxu0 0.0
  %162 = vmatprep.subr.mxu0 0.0
  %163 = vmatpush1.msra.mxu0 0.0
  %164 = vmatprep.subr.mxu0 0.0
  %165 = vmatpush1.msra.mxu0 0.0
  %166 = vmatprep.subr.mxu0 0.0
  %167 = vmatpush1.msra.mxu0 0.0
  %168 = vmatprep.subr.mxu0 0.0
  %169 = vmatpush1.msra.mxu0 0.0
  %170 = vmatprep.subr.mxu0 0.0
  %171 = vmatpush1.msra.mxu0 0.0
  %172 = vmatprep.subr.mxu0 0.0
  %173 = vmatpush1.msra.mxu0 0.0
  %174 = vmatprep.subr.mxu0 0.0
  %175 = vmatpush1.msra.mxu0 0.0
  %176 = vmatprep.subr.mxu0 0.0
  %177 = vmatpush1.msra.mxu0 0.0
  %178 = vmatprep.subr.mxu0 0.0
  %179 = vmatpush1.msra.mxu0 0.0
  %180 = vmatprep.subr.mxu0 0.0
  %181 = vmatpush1.msra.mxu0 0.0
  %182 = vmatprep.subr.mxu0 0.0
  %183 = vmatpush1.msra.mxu0 0.0
  %184 = vmatprep.subr.mxu0 0.0
  %185 = vmatpush1.msra.mxu0 0.0
  %186 = vmatprep.subr.mxu0 0.0
  %187 = vmatpush1.msra.mxu0 0.0
  %188 = vmatprep.subr.mxu0 0.0
  %189 = vmatpush1.msra.mxu0 0.0
  %190 = vmatprep.subr.mxu0 0.0
  %191 = vmatpush1.msra.mxu0 0.0
  %192 = vmatprep.mubr.f32.mxu0 0.0
  %193 = vmatmul.mubr.f32.gmra.mrb[0].mxu0 %v116
  %v194 = vpop.f32.mrb[0].mxu0
  %v195 = vadd.f32 0.0, %v194
  %v196 = vpop.f32.mrb[0].mxu0
  %197 = vmatprep.mubr.f32.mxu0 0.0
  %198 = vmatmul.mubr.f32.gmra.mrb[0].mxu0 %v119
  %v199 = vpop.f32.mrb[0].mxu0
  %v200 = vadd.f32 0.0, %v199
  %v201 = vpop.f32.mrb[0].mxu0
  %202 = vmatprep.mubr.f32.mxu0 0.0
  %203 = vmatmul.mubr.f32.gmra.mrb[0].mxu0 %v122
  %v204 = vpop.f32.mrb[0].mxu0
  %v205 = vadd.f32 0.0, %v204
  %v206 = vpop.f32.mrb[0].mxu0
  %207 = vdwg.mxu0
  %208 = vst.msk [vmem:[%s5 + $0x30] sm:$0xff] %vm76, %v195
  %209 = vst.msk [vmem:[%s5 + $0x38] sm:$0xff] %vm76, %v200
  %210 = vst.msk [vmem:[%s5 + $0x40] sm:$0xff] %vm76, %v205
  // Predicated region
  $region22: #{tokenizer_forward.1} parent=0 // pred_check
    _
  $region23: #{tokenizer_forward.1} parent=0 // pred_check_branch
    %212 = sbr.rel (0) target = $region25
  $region24: #{tokenizer_forward.1} parent=0 // pred_region
    _
  $region25: #{tokenizer_forward.1} parent=0 // pred_fallthru
    _
  // Predicated region
  $region26: #{tokenizer_forward.1} parent=0 // pred_check
    _
  $region27: #{tokenizer_forward.1} parent=0 // pred_check_branch
    %214 = sbr.rel (0) target = $region29
  $region28: #{tokenizer_forward.1} parent=0 // pred_region
    _
  $region29: #{tokenizer_forward.1} parent=0 // pred_fallthru
    _

</llo_original>
